<compile_context>
chip_gen: v7x
topology: tpu7x:2x2x1
jax: 0.10.0
libtpu: 0.0.40
codegen_flags: <defaults>
</compile_context>

<pallas_src>
from functools import partial

import jax
import jax.numpy as jnp
from jax.experimental import pallas as pl
from jax.experimental.pallas import tpu as pltpu

HIDDEN_PAD = 128   # hidden dim 64 padded to a full lane tile
OUT_PAD = 128      # padded width used for the last weight matrix / tanh lanes


def _round_up(x, m):
    return ((x + m - 1) // m) * m


def _mlp_kernel(x_ref, w1_ref, b1_ref, w2_ref, b2_ref, w3_ref, b3_ref, out_ref):
    # x tile: [TB, in_dim] f32 straight from HBM; cast to bf16 here (VALU slack).
    x = x_ref[...].astype(jnp.bfloat16)

    h1 = jnp.dot(x, w1_ref[...], preferred_element_type=jnp.float32) + b1_ref[...]
    h1 = jnp.maximum(h1, 0.0)                                   # relu(fc1), f32

    h2 = jnp.dot(h1.astype(jnp.bfloat16), w2_ref[...],
                 preferred_element_type=jnp.float32) + b2_ref[...]
    h2 = jnp.maximum(h2, 0.0)                                   # relu(fc2), f32

    a = jnp.dot(h2.astype(jnp.bfloat16), w3_ref[...],
                preferred_element_type=jnp.float32) + b3_ref[...]
    # TODO(synk): on v6e/v7x the bias-add/ReLU/tanh could run in bf16 (2x VALU /
    # EUP throughput); kept f32 so the same kernel is correct on v5e.
    # Store only the real action_dim columns (exact-width output array).
    out_ref[...] = jnp.tanh(a)[:, : out_ref.shape[1]]           # tanh -> EUP, f32


@partial(jax.jit, static_argnames=("action_dim", "tb"))
def action_net_forward(x, prepared_params, *, action_dim, tb=2048):
    """x: [B, 2*message_size + 64] float32. Returns [B, action_dim] float32."""
    w1, b1, w2, b2, w3, b3 = prepared_params
    B, in_dim = x.shape

    # Batch tile: aim for >= ~8 grid steps (v7x megacore + pipelining) while
    # capping the tile at `tb`; always a sublane multiple.
    TB = min(tb, max(8, _round_up(pl.cdiv(B, 8), 8)))
    grid = (pl.cdiv(B, TB),)

    flops = 2 * B * (in_dim * HIDDEN_PAD
                     + HIDDEN_PAD * HIDDEN_PAD
                     + HIDDEN_PAD * OUT_PAD)
    bytes_accessed = (x.size * 4                       # f32 input, read once
                      + B * action_dim * 4             # exact-width f32 output
                      + (w1.size + w2.size + w3.size) * 2
                      + (b1.size + b2.size + b3.size) * 4)

    out = pl.pallas_call(
        _mlp_kernel,
        out_shape=jax.ShapeDtypeStruct((B, action_dim), jnp.float32),
        grid=grid,
        in_specs=[
            pl.BlockSpec((TB, in_dim), lambda i: (i, 0)),                 # x tile (f32)
            pl.BlockSpec((in_dim, HIDDEN_PAD), lambda i: (0, 0)),         # w1 (resident)
            pl.BlockSpec((1, HIDDEN_PAD), lambda i: (0, 0)),              # b1
            pl.BlockSpec((HIDDEN_PAD, HIDDEN_PAD), lambda i: (0, 0)),     # w2
            pl.BlockSpec((1, HIDDEN_PAD), lambda i: (0, 0)),              # b2
            pl.BlockSpec((HIDDEN_PAD, OUT_PAD), lambda i: (0, 0)),        # w3
            pl.BlockSpec((1, OUT_PAD), lambda i: (0, 0)),                 # b3
        ],
        out_specs=pl.BlockSpec((TB, action_dim), lambda i: (i, 0)),       # exact width
        compiler_params=pltpu.CompilerParams(
            dimension_semantics=("parallel",)),
        cost_estimate=pl.CostEstimate(
            flops=flops,
            transcendentals=B * OUT_PAD,
            bytes_accessed=bytes_accessed),
    )(x, w1, b1, w2, b2, w3, b3)

    return out


def init_params(key, in_dim, hidden, action_dim):
    """PyTorch-Linear-style U(-1/sqrt(fan_in), +1/sqrt(fan_in)) init.
    Weights stored [in, out] (transposed vs. PyTorch's [out, in])."""
    ks = jax.random.split(key, 6)

    def lin(kw, kb, fan_in, fan_out):
        bound = 1.0 / jnp.sqrt(jnp.float32(fan_in))
        w = jax.random.uniform(kw, (fan_in, fan_out), jnp.float32, -bound, bound)
        b = jax.random.uniform(kb, (1, fan_out), jnp.float32, -bound, bound)
        return w, b

    w1, b1 = lin(ks[0], ks[1], in_dim, hidden)
    w2, b2 = lin(ks[2], ks[3], hidden, hidden)
    w3, b3 = lin(ks[4], ks[5], hidden, action_dim)
    return (w1, b1, w2, b2, w3, b3)


def prepare_params(params, action_dim):
    """Zero-pad hidden 64->128 and last-layer width->128; weights bf16, biases f32."""
    w1, b1, w2, b2, w3, b3 = params
    in_dim, h = w1.shape
    w1p = jnp.zeros((in_dim, HIDDEN_PAD), jnp.bfloat16).at[:, :h].set(
        w1.astype(jnp.bfloat16))
    b1p = jnp.zeros((1, HIDDEN_PAD), jnp.float32).at[:, :h].set(b1)
    w2p = jnp.zeros((HIDDEN_PAD, HIDDEN_PAD), jnp.bfloat16).at[:h, :h].set(
        w2.astype(jnp.bfloat16))
    b2p = jnp.zeros((1, HIDDEN_PAD), jnp.float32).at[:, :h].set(b2)
    w3p = jnp.zeros((HIDDEN_PAD, OUT_PAD), jnp.bfloat16).at[:h, :action_dim].set(
        w3.astype(jnp.bfloat16))
    b3p = jnp.zeros((1, OUT_PAD), jnp.float32).at[:, :action_dim].set(b3)
    return (w1p, b1p, w2p, b2p, w3p, b3p)


def reference_forward_bf16(x, params):
    """Pure-JAX reference matching the kernel's bf16-operand / f32-accum math."""
    w1, b1, w2, b2, w3, b3 = params
    xb = x.astype(jnp.bfloat16)
    h1 = jnp.maximum(jnp.dot(xb, w1.astype(jnp.bfloat16),
                             preferred_element_type=jnp.float32) + b1, 0.0)
    h2 = jnp.maximum(jnp.dot(h1.astype(jnp.bfloat16), w2.astype(jnp.bfloat16),
                             preferred_element_type=jnp.float32) + b2, 0.0)
    a = jnp.dot(h2.astype(jnp.bfloat16), w3.astype(jnp.bfloat16),
                preferred_element_type=jnp.float32) + b3
    return jnp.tanh(a)


def reference_forward_f32(x, params):
    """Exact-f32 reference of the original PyTorch math."""
    w1, b1, w2, b2, w3, b3 = params
    h1 = jnp.maximum(x @ w1 + b1, 0.0)
    h2 = jnp.maximum(h1 @ w2 + b2, 0.0)
    return jnp.tanh(h2 @ w3 + b3)


if __name__ == "__main__":
    # Small shapes consistent with the module: message_size=8 -> in_dim = 2*8 + 64 = 80
    batch = 2
    message_size = 8
    in_dim = 2 * message_size + 64
    hidden = 64
    action_dim = 5

    key = jax.random.PRNGKey(0)
    k_x, k_p = jax.random.split(key)
    x = jax.random.normal(k_x, (batch, in_dim), dtype=jnp.float32)
    params = init_params(k_p, in_dim, hidden, action_dim)
    prepared = prepare_params(params, action_dim)

    out = action_net_forward(x, prepared, action_dim=action_dim)
    out = jax.block_until_ready(out)

    ref_bf16 = reference_forward_bf16(x, params)
    ref_f32 = reference_forward_f32(x, params)
    assert out.shape == (batch, action_dim)
    assert jnp.allclose(out, ref_bf16, atol=2e-3, rtol=2e-3)
    assert jnp.allclose(out, ref_f32, atol=5e-2, rtol=5e-2)

    print("KERNEL_OK")
</pallas_src>

<mosaic_0001>
module attributes {stable_mosaic.version = 11 : i64} {
  func.func @_mlp_kernel(%arg0: i32, %arg1: memref<8x80xf32, #tpu.memory_space<vmem>>, %arg2: memref<80x128xbf16, #tpu.memory_space<vmem>>, %arg3: memref<1x128xf32, #tpu.memory_space<vmem>>, %arg4: memref<128x128xbf16, #tpu.memory_space<vmem>>, %arg5: memref<1x128xf32, #tpu.memory_space<vmem>>, %arg6: memref<128x128xbf16, #tpu.memory_space<vmem>>, %arg7: memref<1x128xf32, #tpu.memory_space<vmem>>, %arg8: memref<8x5xf32, #tpu.memory_space<vmem>>) attributes {dimension_semantics = [#tpu.dimension_semantics<parallel>], iteration_bounds = array<i64: 1>, scalar_prefetch = 0 : i64, scratch_operands = 0 : i64, tpu.core_type = #tpu.core_type<tc>, window_params = [{transform_indices = @transform_0, window_bounds = array<i64: 8, 80>}, {pipeline_mode = #tpu.pipeline_mode<synchronous>, transform_indices = @transform_1, window_bounds = array<i64: 80, 128>}, {pipeline_mode = #tpu.pipeline_mode<synchronous>, transform_indices = @transform_2, window_bounds = array<i64: 1, 128>}, {pipeline_mode = #tpu.pipeline_mode<synchronous>, transform_indices = @transform_3, window_bounds = array<i64: 128, 128>}, {pipeline_mode = #tpu.pipeline_mode<synchronous>, transform_indices = @transform_4, window_bounds = array<i64: 1, 128>}, {pipeline_mode = #tpu.pipeline_mode<synchronous>, transform_indices = @transform_5, window_bounds = array<i64: 128, 128>}, {pipeline_mode = #tpu.pipeline_mode<synchronous>, transform_indices = @transform_6, window_bounds = array<i64: 1, 128>}, {transform_indices = @transform_7, window_bounds = array<i64: 8, 5>}]} {
    %c0 = arith.constant 0 : index
    %c0_0 = arith.constant 0 : index
    %0 = vector.load %arg1[%c0, %c0_0] : memref<8x80xf32, #tpu.memory_space<vmem>>, vector<8x80xf32>
    %1 = arith.truncf %0 : vector<8x80xf32> to vector<8x80xbf16>
    %c0_1 = arith.constant 0 : index
    %c0_2 = arith.constant 0 : index
    %2 = vector.load %arg2[%c0_1, %c0_2] : memref<80x128xbf16, #tpu.memory_space<vmem>>, vector<80x128xbf16>
    %cst = arith.constant dense<0.000000e+00> : vector<8x128xf32>
    %3 = tpu.matmul %1, %2, %cst {dimension_numbers = #tpu.dot_dimension_numbers<[1], [0], [0], [1], [0, 0, 1, 1], [], []>} : vector<8x80xbf16>, vector<80x128xbf16>, vector<8x128xf32> -> vector<8x128xf32>
    %c0_3 = arith.constant 0 : index
    %c0_4 = arith.constant 0 : index
    %4 = vector.load %arg3[%c0_3, %c0_4] : memref<1x128xf32, #tpu.memory_space<vmem>>, vector<1x128xf32>
    %5 = vector.broadcast %4 : vector<1x128xf32> to vector<8x128xf32>
    %6 = arith.addf %3, %5 : vector<8x128xf32>
    %cst_5 = arith.constant 0.000000e+00 : f32
    %7 = vector.broadcast %cst_5 : f32 to vector<8x128xf32>
    %8 = arith.maximumf %6, %7 : vector<8x128xf32>
    %9 = arith.truncf %8 : vector<8x128xf32> to vector<8x128xbf16>
    %c0_6 = arith.constant 0 : index
    %c0_7 = arith.constant 0 : index
    %10 = vector.load %arg4[%c0_6, %c0_7] : memref<128x128xbf16, #tpu.memory_space<vmem>>, vector<128x128xbf16>
    %cst_8 = arith.constant dense<0.000000e+00> : vector<8x128xf32>
    %11 = tpu.matmul %9, %10, %cst_8 {dimension_numbers = #tpu.dot_dimension_numbers<[1], [0], [0], [1], [0, 0, 1, 1], [], []>} : vector<8x128xbf16>, vector<128x128xbf16>, vector<8x128xf32> -> vector<8x128xf32>
    %c0_9 = arith.constant 0 : index
    %c0_10 = arith.constant 0 : index
    %12 = vector.load %arg5[%c0_9, %c0_10] : memref<1x128xf32, #tpu.memory_space<vmem>>, vector<1x128xf32>
    %13 = vector.broadcast %12 : vector<1x128xf32> to vector<8x128xf32>
    %14 = arith.addf %11, %13 : vector<8x128xf32>
    %cst_11 = arith.constant 0.000000e+00 : f32
    %15 = vector.broadcast %cst_11 : f32 to vector<8x128xf32>
    %16 = arith.maximumf %14, %15 : vector<8x128xf32>
    %17 = arith.truncf %16 : vector<8x128xf32> to vector<8x128xbf16>
    %c0_12 = arith.constant 0 : index
    %c0_13 = arith.constant 0 : index
    %18 = vector.load %arg6[%c0_12, %c0_13] : memref<128x128xbf16, #tpu.memory_space<vmem>>, vector<128x128xbf16>
    %cst_14 = arith.constant dense<0.000000e+00> : vector<8x128xf32>
    %19 = tpu.matmul %17, %18, %cst_14 {dimension_numbers = #tpu.dot_dimension_numbers<[1], [0], [0], [1], [0, 0, 1, 1], [], []>} : vector<8x128xbf16>, vector<128x128xbf16>, vector<8x128xf32> -> vector<8x128xf32>
    %c0_15 = arith.constant 0 : index
    %c0_16 = arith.constant 0 : index
    %20 = vector.load %arg7[%c0_15, %c0_16] : memref<1x128xf32, #tpu.memory_space<vmem>>, vector<1x128xf32>
    %21 = vector.broadcast %20 : vector<1x128xf32> to vector<8x128xf32>
    %22 = arith.addf %19, %21 : vector<8x128xf32>
    %23 = math.tanh %22 : vector<8x128xf32>
    %24 = vector.extract_strided_slice %23 {offsets = [0, 0], sizes = [8, 5], strides = [1, 1]} : vector<8x128xf32> to vector<8x5xf32>
    %c0_17 = arith.constant 0 : index
    %c0_18 = arith.constant 0 : index
    %25 = vector.load %arg8[%c0_17, %c0_18] : memref<8x5xf32, #tpu.memory_space<vmem>>, vector<8x5xf32>
    tpu.vector_store %arg8[%c0_17, %c0_18], %24 {strides = array<i32>} : memref<8x5xf32, #tpu.memory_space<vmem>>, vector<8x5xf32>,
    return
  }
  func.func @transform_0(%arg0: i32) -> (i32, i32) {
    %c0_i32 = arith.constant 0 : i32
    %c0_i32_0 = arith.constant 0 : i32
    return %arg0, %c0_i32 : i32, i32
  }
  func.func @transform_1(%arg0: i32) -> (i32, i32) {
    %c0_i32 = arith.constant 0 : i32
    %c0_i32_0 = arith.constant 0 : i32
    %c0_i32_1 = arith.constant 0 : i32
    return %c0_i32, %c0_i32_0 : i32, i32
  }
  func.func @transform_2(%arg0: i32) -> (i32, i32) {
    %c0_i32 = arith.constant 0 : i32
    %c0_i32_0 = arith.constant 0 : i32
    %c0_i32_1 = arith.constant 0 : i32
    return %c0_i32, %c0_i32_0 : i32, i32
  }
  func.func @transform_3(%arg0: i32) -> (i32, i32) {
    %c0_i32 = arith.constant 0 : i32
    %c0_i32_0 = arith.constant 0 : i32
    %c0_i32_1 = arith.constant 0 : i32
    return %c0_i32, %c0_i32_0 : i32, i32
  }
  func.func @transform_4(%arg0: i32) -> (i32, i32) {
    %c0_i32 = arith.constant 0 : i32
    %c0_i32_0 = arith.constant 0 : i32
    %c0_i32_1 = arith.constant 0 : i32
    return %c0_i32, %c0_i32_0 : i32, i32
  }
  func.func @transform_5(%arg0: i32) -> (i32, i32) {
    %c0_i32 = arith.constant 0 : i32
    %c0_i32_0 = arith.constant 0 : i32
    %c0_i32_1 = arith.constant 0 : i32
    return %c0_i32, %c0_i32_0 : i32, i32
  }
  func.func @transform_6(%arg0: i32) -> (i32, i32) {
    %c0_i32 = arith.constant 0 : i32
    %c0_i32_0 = arith.constant 0 : i32
    %c0_i32_1 = arith.constant 0 : i32
    return %c0_i32, %c0_i32_0 : i32, i32
  }
  func.func @transform_7(%arg0: i32) -> (i32, i32) {
    %c0_i32 = arith.constant 0 : i32
    %c0_i32_0 = arith.constant 0 : i32
    return %arg0, %c0_i32 : i32, i32
  }
}

</mosaic_0001>

<llo_original>
// kernel: action_net_forward.1
$region0: #{action_net_forward.1}
  #allocation0 [shape = 'u32[]', space=smem, size = 0x4, offset = 0x4, fixed_abs, tag = 'smem constant byte address 0x4 - core index']
  #allocation1 [shape = 'u32[144,128]{1,0:T(1,128)}', space=vmem, size = 0x12000, scoped, tag = 'internal scratch']
  %s0 = inlined_call_operand.hbm [shape: f32[2,80], index: 0, kind: input, shape index: {}]
  %s1 = inlined_call_operand.hbm [shape: bf16[80,128], index: 1, kind: input, shape index: {}]
  %s2 = inlined_call_operand.vmem [shape: f32[1,128], index: 2, kind: input, shape index: {}]
  %s3 = inlined_call_operand.hbm [shape: bf16[128,128], index: 3, kind: input, shape index: {}]
  %s4 = inlined_call_operand.vmem [shape: f32[1,128], index: 4, kind: input, shape index: {}]
  %s5 = inlined_call_operand.hbm [shape: bf16[128,128], index: 5, kind: input, shape index: {}]
  %s6 = inlined_call_operand.vmem [shape: f32[1,128], index: 6, kind: input, shape index: {}]
  %s7 = inlined_call_operand.hbm [shape: f32[2,5], index: 7, kind: output, shape index: {}]
  %s8 = sld [smem:[#allocation0]]
  $region54: #{action_net_forward.1} parent=0
    _
  %s10 = ssub.s32 1, %s8
  %s11 = scalar_select 0, %s10, %s8
  $region1: #{action_net_forward.1} parent=0
    #allocation2 [shape = 'u8[4096]{0}', space=vmem, size = 0x1000, scoped, tag = 'input window, operand 0, single buffered']
    #allocation3 [shape = 's32[1]{0}', space=sflag, size = 0x4, scoped, tag = 'scoped memory for action_net_forward.1']
    #allocation4 [shape = 's32[1]{0}', space=sflag, size = 0x4, scoped, tag = 'scoped memory for action_net_forward.1']
    #allocation5 [shape = 'u8[20480]{0}', space=vmem, size = 0x5000, scoped, tag = 'input window, operand 1, single buffered']
    #allocation6 [shape = 's32[1]{0}', space=sflag, size = 0x4, scoped, tag = 'scoped memory for action_net_forward.1']
    #allocation7 [shape = 'u8[32768]{0}', space=vmem, size = 0x8000, scoped, tag = 'input window, operand 3, single buffered']
    #allocation8 [shape = 'u8[32768]{0}', space=vmem, size = 0x8000, scoped, tag = 'input window, operand 5, single buffered']
    #allocation9 [shape = 's32[1]{0}', space=sflag, size = 0x4, scoped, tag = 'scoped memory for action_net_forward.1']
    #allocation10 [shape = 'u8[4096]{0}', space=vmem, size = 0x1000, scoped, tag = 'output window, operand 0, single buffered']
    %12 = vsyncpa [#allocation3], 0
    %13 = vsyncpa [#allocation6], 0
    %14 = vsyncpa [#allocation9], 0
    %15 = vsyncpa [#allocation4], 0
    // Predicated region
    $region2: #{action_net_forward.1} parent=1 // pred_check
      _
    $region3: #{action_net_forward.1} parent=1 // pred_check_branch
      %17 = sbr.rel (0) target = $region5
    $region4: #{action_net_forward.1} parent=1 // pred_region
      %s19 = ssub.s32 128, 32
      %20 = vsyncadd [#allocation3], %s19
      %s21 = sshll.u32 [#allocation2], 4
      %s22 = int_to_ptr.vmem [resolvable:$true] %s21
      %27 = dma.hbm_to_vmem [thread:$0]  %s0, 32, %s22, [#allocation3], 32, 32, 2
    $region5: #{action_net_forward.1} parent=1 // pred_fallthru
      _
    // Predicated region
    $region6: #{action_net_forward.1} parent=1 // pred_check
      _
    $region7: #{action_net_forward.1} parent=1 // pred_check_branch
      %29 = sbr.rel (0) target = $region9
    $region8: #{action_net_forward.1} parent=1 // pred_region
      %s31 = ssub.s32 640, 640
      %32 = vsyncadd [#allocation6], %s31
      %s33 = sshll.u32 [#allocation5], 4
      %s34 = int_to_ptr.vmem [resolvable:$true] %s33
      %39 = dma.hbm_to_vmem [thread:$0]  %s1, 640, %s34, [#allocation6], 64, 64, 4
    $region9: #{action_net_forward.1} parent=1 // pred_fallthru
      _
    // Predicated region
    $region10: #{action_net_forward.1} parent=1 // pred_check
      _
    $region11: #{action_net_forward.1} parent=1 // pred_check_branch
      %41 = sbr.rel (0) target = $region13
    $region12: #{action_net_forward.1} parent=1 // pred_region
      _
    $region13: #{action_net_forward.1} parent=1 // pred_fallthru
      _
    // Predicated region
    $region14: #{action_net_forward.1} parent=1 // pred_check
      _
    $region15: #{action_net_forward.1} parent=1 // pred_check_branch
      %43 = sbr.rel (0) target = $region17
    $region16: #{action_net_forward.1} parent=1 // pred_region
      %s45 = ssub.s32 1024, 1024
      %46 = vsyncadd [#allocation6], %s45
      %s47 = sshll.u32 [#allocation7], 4
      %s48 = int_to_ptr.vmem [resolvable:$true] %s47
      %53 = dma.hbm_to_vmem [thread:$0]  %s3, 1024, %s48, [#allocation6], 64, 64, 4
    $region17: #{action_net_forward.1} parent=1 // pred_fallthru
      _
    // Predicated region
    $region18: #{action_net_forward.1} parent=1 // pred_check
      _
    $region19: #{action_net_forward.1} parent=1 // pred_check_branch
      %55 = sbr.rel (0) target = $region21
    $region20: #{action_net_forward.1} parent=1 // pred_region
      _
    $region21: #{action_net_forward.1} parent=1 // pred_fallthru
      _
    // Predicated region
    $region22: #{action_net_forward.1} parent=1 // pred_check
      _
    $region23: #{action_net_forward.1} parent=1 // pred_check_branch
      %57 = sbr.rel (0) target = $region25
    $region24: #{action_net_forward.1} parent=1 // pred_region
      %s59 = ssub.s32 1024, 1024
      %60 = vsyncadd [#allocation9], %s59
      %s61 = sshll.u32 [#allocation8], 4
      %s62 = int_to_ptr.vmem [resolvable:$true] %s61
      %67 = dma.hbm_to_vmem [thread:$0]  %s5, 1024, %s62, [#allocation9], 64, 64, 4
    $region25: #{action_net_forward.1} parent=1 // pred_fallthru
      _
    // Predicated region
    $region26: #{action_net_forward.1} parent=1 // pred_check
      _
    $region27: #{action_net_forward.1} parent=1 // pred_check_branch
      %69 = sbr.rel (0) target = $region29
    $region28: #{action_net_forward.1} parent=1 // pred_region
      _
    $region29: #{action_net_forward.1} parent=1 // pred_fallthru
      _
    // Predicated region
    $region30: #{action_net_forward.1} parent=1 // pred_check
      _
    $region31: #{action_net_forward.1} parent=1 // pred_check_branch
      %71 = sbr.rel (0) target = $region33
    $region32: #{action_net_forward.1} parent=1 // pred_region
      %72 = dma.done [#allocation3], 128
    $region33: #{action_net_forward.1} parent=1 // pred_fallthru
      _
    // Predicated region
    $region34: #{action_net_forward.1} parent=1 // pred_check
      _
    $region35: #{action_net_forward.1} parent=1 // pred_check_branch
      %74 = sbr.rel (0) target = $region37
    $region36: #{action_net_forward.1} parent=1 // pred_region
      %75 = dma.done [#allocation6], 640
    $region37: #{action_net_forward.1} parent=1 // pred_fallthru
      _
    // Predicated region
    $region38: #{action_net_forward.1} parent=1 // pred_check
      _
    $region39: #{action_net_forward.1} parent=1 // pred_check_branch
      %77 = sbr.rel (0) target = $region41
    $region40: #{action_net_forward.1} parent=1 // pred_region
      %78 = dma.done [#allocation6], 1024
    $region41: #{action_net_forward.1} parent=1 // pred_fallthru
      _
    // Predicated region
    $region42: #{action_net_forward.1} parent=1 // pred_check
      _
    $region43: #{action_net_forward.1} parent=1 // pred_check_branch
      %80 = sbr.rel (0) target = $region45
    $region44: #{action_net_forward.1} parent=1 // pred_region
      %81 = dma.done [#allocation9], 1024
    $region45: #{action_net_forward.1} parent=1 // pred_fallthru
      _
    %v83 = vld [vmem:[#allocation2] sm:$0xff]
    %v84 = vpack.c.bf16 %v83, %v83
    %v85 = vld [vmem:[#allocation5] sm:$0xf]
    %v86 = vld [vmem:[#allocation5 + $0x4] sm:$0xf]
    %v87 = vld [vmem:[#allocation5 + $0x8] sm:$0xf]
    %v88 = vld [vmem:[#allocation5 + $0xc] sm:$0xf]
    %v89 = vld [vmem:[#allocation5 + $0x10] sm:$0xf]
    %v90 = vld [vmem:[#allocation5 + $0x14] sm:$0xf]
    %v91 = vld [vmem:[#allocation5 + $0x18] sm:$0xf]
    %v92 = vld [vmem:[#allocation5 + $0x1c] sm:$0xf]
    %v93 = vld [vmem:[#allocation5 + $0x20] sm:$0xf]
    %v94 = vld [vmem:[#allocation5 + $0x24] sm:$0xf]
    %v95 = vld [vmem:[%s2] sm:$0x1]
    %v97 = vlaneseq
    %v98 = vshrl.u32 %v97, 7
    %v99 = vsub.s32 0, %v98
    %v100 = vrot.slane %v95, %v99
    %v112 = vunpack.c.l.b16 %v85
    %v113 = vunpack.c.l.b16 %v86
    %v114 = vunpack.c.l.b16 %v87
    %v115 = vunpack.c.l.b16 %v88
    %v116 = vunpack.c.l.b16 %v89
    %v117 = vunpack.c.l.b16 %v90
    %v118 = vunpack.c.l.b16 %v91
    %v119 = vunpack.c.l.b16 %v92
    %v120 = vunpack.c.l.b16 %v93
    %v121 = vunpack.c.l.b16 %v94
    %v122 = vpack.c.b16 %v113, %v112
    %v123 = vpack.c.b16 %v115, %v114
    %v124 = vpack.c.b16 %v117, %v116
    %v125 = vpack.c.b16 %v119, %v118
    %v126 = vpack.c.b16 %v121, %v120
    %vm132 = vcmask 654336
    %v134 = vsel %vm132, %v84, 0
    %136 = vmatprep.subr.bf16.mxu0 0
    %137 = vmatpush1.bf16.msra.mxu0 %v122
    %138 = vmatprep.subr.bf16.mxu0 0
    %139 = vmatpush1.bf16.msra.mxu0 %v123
    %140 = vmatprep.subr.bf16.mxu0 0
    %141 = vmatpush1.bf16.msra.mxu0 %v124
    %142 = vmatprep.subr.bf16.mxu0 0
    %143 = vmatpush1.bf16.msra.mxu0 %v125
    %144 = vmatprep.subr.bf16.mxu0 0
    %145 = vmatpush1.bf16.msra.mxu0 %v126
    %146 = vmatprep.subr.bf16.mxu0 0
    %147 = vmatpush1.bf16.msra.mxu0 0
    %148 = vmatprep.subr.bf16.mxu0 0
    %149 = vmatpush1.bf16.msra.mxu0 0
    %150 = vmatprep.subr.bf16.mxu0 0
    %151 = vmatpush1.bf16.msra.mxu0 0
    %152 = vmatprep.subr.bf16.mxu0 0
    %153 = vmatpush1.bf16.msra.mxu0 0
    %154 = vmatprep.subr.bf16.mxu0 0
    %155 = vmatpush1.bf16.msra.mxu0 0
    %156 = vmatprep.subr.bf16.mxu0 0
    %157 = vmatpush1.bf16.msra.mxu0 0
    %158 = vmatprep.subr.bf16.mxu0 0
    %159 = vmatpush1.bf16.msra.mxu0 0
    %160 = vmatprep.subr.bf16.mxu0 0
    %161 = vmatpush1.bf16.msra.mxu0 0
    %162 = vmatprep.subr.bf16.mxu0 0
    %163 = vmatpush1.bf16.msra.mxu0 0
    %164 = vmatprep.subr.bf16.mxu0 0
    %165 = vmatpush1.bf16.msra.mxu0 0
    %166 = vmatprep.subr.bf16.mxu0 0
    %167 = vmatpush1.bf16.msra.mxu0 0
    %168 = vmatprep.mubr.bf16.mxu0 0
    %169 = vmatmul.mubr.bf16.gmra.mrb[0].mxu0 %v134
    %v170 = vpop.f32.mrb[0].mxu0
    %v171 = vadd.f32 %v100, %v170
    %v172 = vpop.f32.mrb[0].mxu0
    %v173 = vpop.f32.mrb[0].mxu0
    %v174 = vpop.f32.mrb[0].mxu0
    %175 = vdwg.mxu0
    %v176 = vmax.f32 %v171, 0.0
    %v177 = vpack.c.bf16 %v176, %v176
    %v178 = vld [vmem:[#allocation7] sm:$0xf]
    %v179 = vld [vmem:[#allocation7 + $0x4] sm:$0xf]
    %v180 = vld [vmem:[#allocation7 + $0x8] sm:$0xf]
    %v181 = vld [vmem:[#allocation7 + $0xc] sm:$0xf]
    %v182 = vld [vmem:[#allocation7 + $0x10] sm:$0xf]
    %v183 = vld [vmem:[#allocation7 + $0x14] sm:$0xf]
    %v184 = vld [vmem:[#allocation7 + $0x18] sm:$0xf]
    %v185 = vld [vmem:[#allocation7 + $0x1c] sm:$0xf]
    %v186 = vld [vmem:[#allocation7 + $0x20] sm:$0xf]
    %v187 = vld [vmem:[#allocation7 + $0x24] sm:$0xf]
    %v188 = vld [vmem:[#allocation7 + $0x28] sm:$0xf]
    %v189 = vld [vmem:[#allocation7 + $0x2c] sm:$0xf]
    %v190 = vld [vmem:[#allocation7 + $0x30] sm:$0xf]
    %v191 = vld [vmem:[#allocation7 + $0x34] sm:$0xf]
    %v192 = vld [vmem:[#allocation7 + $0x38] sm:$0xf]
    %v193 = vld [vmem:[#allocation7 + $0x3c] sm:$0xf]
    %v194 = vld [vmem:[%s4] sm:$0x1]
    %v196 = vlaneseq
    %v197 = vshrl.u32 %v196, 7
    %v198 = vsub.s32 0, %v197
    %v199 = vrot.slane %v194, %v198
    %v217 = vunpack.c.l.b16 %v178
    %v218 = vunpack.c.l.b16 %v179
    %v219 = vunpack.c.l.b16 %v180
    %v220 = vunpack.c.l.b16 %v181
    %v221 = vunpack.c.l.b16 %v182
    %v222 = vunpack.c.l.b16 %v183
    %v223 = vunpack.c.l.b16 %v184
    %v224 = vunpack.c.l.b16 %v185
    %v225 = vunpack.c.l.b16 %v186
    %v226 = vunpack.c.l.b16 %v187
    %v227 = vunpack.c.l.b16 %v188
    %v228 = vunpack.c.l.b16 %v189
    %v229 = vunpack.c.l.b16 %v190
    %v230 = vunpack.c.l.b16 %v191
    %v231 = vunpack.c.l.b16 %v192
    %v232 = vunpack.c.l.b16 %v193
    %v233 = vpack.c.b16 %v218, %v217
    %v234 = vpack.c.b16 %v220, %v219
    %v235 = vpack.c.b16 %v222, %v221
    %v236 = vpack.c.b16 %v224, %v223
    %v237 = vpack.c.b16 %v226, %v225
    %v238 = vpack.c.b16 %v228, %v227
    %v239 = vpack.c.b16 %v230, %v229
    %v240 = vpack.c.b16 %v232, %v231
    %249 = vmatprep.subr.bf16.mxu0 0
    %250 = vmatpush1.bf16.msra.mxu0 %v233
    %251 = vmatprep.subr.bf16.mxu0 0
    %252 = vmatpush1.bf16.msra.mxu0 %v234
    %253 = vmatprep.subr.bf16.mxu0 0
    %254 = vmatpush1.bf16.msra.mxu0 %v235
    %255 = vmatprep.subr.bf16.mxu0 0
    %256 = vmatpush1.bf16.msra.mxu0 %v236
    %257 = vmatprep.subr.bf16.mxu0 0
    %258 = vmatpush1.bf16.msra.mxu0 %v237
    %259 = vmatprep.subr.bf16.mxu0 0
    %260 = vmatpush1.bf16.msra.mxu0 %v238
    %261 = vmatprep.subr.bf16.mxu0 0
    %262 = vmatpush1.bf16.msra.mxu0 %v239
    %263 = vmatprep.subr.bf16.mxu0 0
    %264 = vmatpush1.bf16.msra.mxu0 %v240
    %265 = vmatprep.subr.bf16.mxu0 0
    %266 = vmatpush1.bf16.msra.mxu0 0
    %267 = vmatprep.subr.bf16.mxu0 0
    %268 = vmatpush1.bf16.msra.mxu0 0
    %269 = vmatprep.subr.bf16.mxu0 0
    %270 = vmatpush1.bf16.msra.mxu0 0
    %271 = vmatprep.subr.bf16.mxu0 0
    %272 = vmatpush1.bf16.msra.mxu0 0
    %273 = vmatprep.subr.bf16.mxu0 0
    %274 = vmatpush1.bf16.msra.mxu0 0
    %275 = vmatprep.subr.bf16.mxu0 0
    %276 = vmatpush1.bf16.msra.mxu0 0
    %277 = vmatprep.subr.bf16.mxu0 0
    %278 = vmatpush1.bf16.msra.mxu0 0
    %279 = vmatprep.subr.bf16.mxu0 0
    %280 = vmatpush1.bf16.msra.mxu0 0
    %281 = vmatprep.mubr.bf16.mxu0 0
    %282 = vmatmul.mubr.bf16.gmra.mrb[0].mxu0 %v177
    %v283 = vpop.f32.mrb[0].mxu0
    %v284 = vadd.f32 %v199, %v283
    %v285 = vpop.f32.mrb[0].mxu0
    %v286 = vpop.f32.mrb[0].mxu0
    %v287 = vpop.f32.mrb[0].mxu0
    %288 = vdwg.mxu0
    %v289 = vmax.f32 %v284, 0.0
    %v290 = vpack.c.bf16 %v289, %v289
    %v291 = vld [vmem:[#allocation8] sm:$0xf]
    %v292 = vld [vmem:[#allocation8 + $0x4] sm:$0xf]
    %v293 = vld [vmem:[#allocation8 + $0x8] sm:$0xf]
    %v294 = vld [vmem:[#allocation8 + $0xc] sm:$0xf]
    %v295 = vld [vmem:[#allocation8 + $0x10] sm:$0xf]
    %v296 = vld [vmem:[#allocation8 + $0x14] sm:$0xf]
    %v297 = vld [vmem:[#allocation8 + $0x18] sm:$0xf]
    %v298 = vld [vmem:[#allocation8 + $0x1c] sm:$0xf]
    %v299 = vld [vmem:[#allocation8 + $0x20] sm:$0xf]
    %v300 = vld [vmem:[#allocation8 + $0x24] sm:$0xf]
    %v301 = vld [vmem:[#allocation8 + $0x28] sm:$0xf]
    %v302 = vld [vmem:[#allocation8 + $0x2c] sm:$0xf]
    %v303 = vld [vmem:[#allocation8 + $0x30] sm:$0xf]
    %v304 = vld [vmem:[#allocation8 + $0x34] sm:$0xf]
    %v305 = vld [vmem:[#allocation8 + $0x38] sm:$0xf]
    %v306 = vld [vmem:[#allocation8 + $0x3c] sm:$0xf]
    %v307 = vld [vmem:[%s6] sm:$0x1]
    %v309 = vlaneseq
    %v310 = vshrl.u32 %v309, 7
    %v311 = vsub.s32 0, %v310
    %v312 = vrot.slane %v307, %v311
    %v330 = vunpack.c.l.b16 %v291
    %v331 = vunpack.c.l.b16 %v292
    %v332 = vunpack.c.l.b16 %v293
    %v333 = vunpack.c.l.b16 %v294
    %v334 = vunpack.c.l.b16 %v295
    %v335 = vunpack.c.l.b16 %v296
    %v336 = vunpack.c.l.b16 %v297
    %v337 = vunpack.c.l.b16 %v298
    %v338 = vunpack.c.l.b16 %v299
    %v339 = vunpack.c.l.b16 %v300
    %v340 = vunpack.c.l.b16 %v301
    %v341 = vunpack.c.l.b16 %v302
    %v342 = vunpack.c.l.b16 %v303
    %v343 = vunpack.c.l.b16 %v304
    %v344 = vunpack.c.l.b16 %v305
    %v345 = vunpack.c.l.b16 %v306
    %v346 = vpack.c.b16 %v331, %v330
    %v347 = vpack.c.b16 %v333, %v332
    %v348 = vpack.c.b16 %v335, %v334
    %v349 = vpack.c.b16 %v337, %v336
    %v350 = vpack.c.b16 %v339, %v338
    %v351 = vpack.c.b16 %v341, %v340
    %v352 = vpack.c.b16 %v343, %v342
    %v353 = vpack.c.b16 %v345, %v344
    %362 = vmatprep.subr.bf16.mxu0 0
    %363 = vmatpush1.bf16.msra.mxu0 %v346
    %364 = vmatprep.subr.bf16.mxu0 0
    %365 = vmatpush1.bf16.msra.mxu0 %v347
    %366 = vmatprep.subr.bf16.mxu0 0
    %367 = vmatpush1.bf16.msra.mxu0 %v348
    %368 = vmatprep.subr.bf16.mxu0 0
    %369 = vmatpush1.bf16.msra.mxu0 %v349
    %370 = vmatprep.subr.bf16.mxu0 0
    %371 = vmatpush1.bf16.msra.mxu0 %v350
    %372 = vmatprep.subr.bf16.mxu0 0
    %373 = vmatpush1.bf16.msra.mxu0 %v351
    %374 = vmatprep.subr.bf16.mxu0 0
    %375 = vmatpush1.bf16.msra.mxu0 %v352
    %376 = vmatprep.subr.bf16.mxu0 0
    %377 = vmatpush1.bf16.msra.mxu0 %v353
    %378 = vmatprep.subr.bf16.mxu0 0
    %379 = vmatpush1.bf16.msra.mxu0 0
    %380 = vmatprep.subr.bf16.mxu0 0
    %381 = vmatpush1.bf16.msra.mxu0 0
    %382 = vmatprep.subr.bf16.mxu0 0
    %383 = vmatpush1.bf16.msra.mxu0 0
    %384 = vmatprep.subr.bf16.mxu0 0
    %385 = vmatpush1.bf16.msra.mxu0 0
    %386 = vmatprep.subr.bf16.mxu0 0
    %387 = vmatpush1.bf16.msra.mxu0 0
    %388 = vmatprep.subr.bf16.mxu0 0
    %389 = vmatpush1.bf16.msra.mxu0 0
    %390 = vmatprep.subr.bf16.mxu0 0
    %391 = vmatpush1.bf16.msra.mxu0 0
    %392 = vmatprep.subr.bf16.mxu0 0
    %393 = vmatpush1.bf16.msra.mxu0 0
    %394 = vmatprep.mubr.bf16.mxu0 0
    %395 = vmatmul.mubr.bf16.gmra.mrb[0].mxu0 %v290
    %v396 = vpop.f32.mrb[0].mxu0
    %v397 = vadd.f32 %v312, %v396
    %v398 = vpop.f32.mrb[0].mxu0
    %v399 = vpop.f32.mrb[0].mxu0
    %v400 = vpop.f32.mrb[0].mxu0
    %401 = vdwg.mxu0
    %v402 = vtanh.pop %v397
    %vm403 = vcmask 39936
    %404 = vst.msk [vmem:[#allocation10] sm:$0xff] %vm403, %v402
    // Predicated region
    $region46: #{action_net_forward.1} parent=1 // pred_check
      _
    $region47: #{action_net_forward.1} parent=1 // pred_check_branch
      %406 = sbr.rel (0) target = $region49
    $region48: #{action_net_forward.1} parent=1 // pred_region
      %s408 = ssub.s32 128, 32
      %409 = vsyncadd [#allocation4], %s408
      %s410 = sshll.u32 [#allocation10], 4
      %s411 = int_to_ptr.vmem [resolvable:$true] %s410
      %416 = dma.vmem_to_hbm [thread:$0]  %s411, 32, %s7, [#allocation4], 32, 32, 2
    $region49: #{action_net_forward.1} parent=1 // pred_fallthru
      _
    // Predicated region
    $region50: #{action_net_forward.1} parent=1 // pred_check
      _
    $region51: #{action_net_forward.1} parent=1 // pred_check_branch
      %418 = sbr.rel (0) target = $region53
    $region52: #{action_net_forward.1} parent=1 // pred_region
      %419 = dma.done [#allocation4], 128
    $region53: #{action_net_forward.1} parent=1 // pred_fallthru
      _
    %420 = vsyncpa [#allocation3], 1
    %421 = vsyncpa [#allocation6], 1
    %422 = vsyncpa [#allocation9], 1
    %423 = vsyncpa [#allocation4], 1

</llo_original>
